<compile_context>
chip_gen: v6e
topology: v6e:2x2x1
jax: 0.10.0
libtpu: 0.0.40
codegen_flags: <defaults>
</compile_context>

<pallas_src>
from functools import partial

import jax
import jax.numpy as jnp
from jax.experimental import pallas as pl
from jax.experimental.pallas import tpu as pltpu

SHAPE = (30, 30)                       # logical parameter / input shape
N_LIVE = SHAPE[0] * SHAPE[1]           # 900 live elements
VREG_SHAPE = (8, 128)                  # one f32 vreg, lane-dense
N_PAD = VREG_SHAPE[0] * VREG_SHAPE[1]  # 1024


def _mul_clamp_kernel(mem_ref, x_ref, o_ref):
    # Single-vreg elementwise: out = clamp(memory * x, 0, 1)
    o_ref[...] = jnp.clip(mem_ref[...] * x_ref[...], 0.0, 1.0)


def _to_vreg(a: jax.Array) -> jax.Array:
    """(30, 30) -> lane-dense (8, 128) zero-padded slab."""
    flat = a.reshape(-1)
    return jnp.pad(flat, (0, N_PAD - N_LIVE)).reshape(VREG_SHAPE)


@partial(jax.jit)
def net_forward(memory: jax.Array, x: jax.Array) -> jax.Array:
    """Pallas equivalent of Net.forward.

    memory: (30, 30) float32 parameter
    x:      (30, 30) float32 input
    """
    mem_p = _to_vreg(memory.astype(jnp.float32))
    x_p = _to_vreg(x.astype(jnp.float32))

    out_p = pl.pallas_call(
        _mul_clamp_kernel,
        out_shape=jax.ShapeDtypeStruct(VREG_SHAPE, jnp.float32),
        in_specs=[
            pl.BlockSpec(memory_space=pltpu.MemorySpace.VMEM),
            pl.BlockSpec(memory_space=pltpu.MemorySpace.VMEM),
        ],
        out_specs=pl.BlockSpec(memory_space=pltpu.MemorySpace.VMEM),
        # x_p (input index 1) is a wrapper-local intermediate -> safe to reuse
        # its HBM buffer for the output.
        input_output_aliases={1: 0},
    )(mem_p, x_p)

    return out_p.reshape(-1)[:N_LIVE].reshape(SHAPE)


if __name__ == "__main__":
    key = jax.random.PRNGKey(0)
    k_mem, k_x = jax.random.split(key)

    # nn.Parameter(torch.rand((30, 30))) -> uniform [0, 1)
    memory = jax.random.uniform(k_mem, SHAPE, dtype=jnp.float32)
    # Centered input so clamp(0, 1) actually clips some values.
    x = jax.random.normal(k_x, SHAPE, dtype=jnp.float32)

    out = net_forward(memory, x)
    out = jax.block_until_ready(out)

    # Sanity check against pure-JAX reference.
    ref = jnp.clip(memory * x, 0.0, 1.0)
    assert out.shape == SHAPE
    assert jnp.allclose(out, ref, atol=1e-6), "mismatch vs reference"

    print("KERNEL_OK")
</pallas_src>

<mosaic_0001>
module attributes {stable_mosaic.version = 11 : i64} {
  func.func @_mul_clamp_kernel(%arg0: memref<8x128xf32, #tpu.memory_space<vmem>>, %arg1: memref<8x128xf32, #tpu.memory_space<vmem>>, %arg2: memref<8x128xf32, #tpu.memory_space<vmem>>) attributes {dimension_semantics = [], scalar_prefetch = 0 : i64, scratch_operands = 0 : i64, tpu.core_type = #tpu.core_type<tc>} {
    %c0 = arith.constant 0 : index
    %c0_0 = arith.constant 0 : index
    %0 = vector.load %arg0[%c0, %c0_0] : memref<8x128xf32, #tpu.memory_space<vmem>>, vector<8x128xf32>
    %c0_1 = arith.constant 0 : index
    %c0_2 = arith.constant 0 : index
    %1 = vector.load %arg1[%c0_1, %c0_2] : memref<8x128xf32, #tpu.memory_space<vmem>>, vector<8x128xf32>
    %2 = arith.mulf %0, %1 : vector<8x128xf32>
    %cst = arith.constant 0.000000e+00 : f32
    %cst_3 = arith.constant 1.000000e+00 : f32
    %3 = vector.broadcast %cst : f32 to vector<8x128xf32>
    %4 = arith.maximumf %3, %2 : vector<8x128xf32>
    %5 = vector.broadcast %cst_3 : f32 to vector<8x128xf32>
    %6 = arith.minimumf %5, %4 : vector<8x128xf32>
    %c0_4 = arith.constant 0 : index
    %c0_5 = arith.constant 0 : index
    %7 = vector.load %arg2[%c0_4, %c0_5] : memref<8x128xf32, #tpu.memory_space<vmem>>, vector<8x128xf32>
    tpu.vector_store %arg2[%c0_4, %c0_5], %6 {strides = array<i32>} : memref<8x128xf32, #tpu.memory_space<vmem>>, vector<8x128xf32>,
    return
  }
}

</mosaic_0001>

<llo_original>
// kernel: net_forward.1
$region0: #{net_forward.1}
  #allocation0 [shape = 'u32[]', space=smem, size = 0x4, offset = 0x4, fixed_abs, tag = 'smem constant byte address 0x4 - core index']
  #allocation1 [shape = 'u32[144,128]{1,0:T(1,128)}', space=vmem, size = 0x12000, scoped, tag = 'internal scratch']
  %s0 = inlined_call_operand.vmem [shape: f32[8,128], index: 0, kind: input, shape index: {}]
  %s1 = inlined_call_operand.vmem [shape: f32[8,128], index: 1, kind: input, shape index: {}, may-alias: {1,2}]
  %s2 = inlined_call_operand.vmem [shape: f32[8,128], index: 2, kind: output, shape index: {}, may-alias: {1,2}]
  %s3 = sld [smem:[#allocation0]]
  $region18: #{net_forward.1} parent=0
    _
  %s5 = ssub.s32 1, %s3
  %s6 = scalar_select 0, %s5, %s3
  // Predicated region
  $region2: #{net_forward.1} parent=0 // pred_check
    _
  $region3: #{net_forward.1} parent=0 // pred_check_branch
    %8 = sbr.rel (0) target = $region5
  $region4: #{net_forward.1} parent=0 // pred_region
    _
  $region5: #{net_forward.1} parent=0 // pred_fallthru
    _
  // Predicated region
  $region6: #{net_forward.1} parent=0 // pred_check
    _
  $region7: #{net_forward.1} parent=0 // pred_check_branch
    %10 = sbr.rel (0) target = $region9
  $region8: #{net_forward.1} parent=0 // pred_region
    _
  $region9: #{net_forward.1} parent=0 // pred_fallthru
    _
  %v11 = vld [vmem:[%s0] sm:$0xff]
  %v12 = vld [vmem:[%s1] sm:$0xff]
  %v13 = vmul.f32 %v11, %v12
  %v14 = vmax.f32 %v13, 0.0
  %v15 = vmin.f32 %v14, 1.0
  %16 = vst [vmem:[%s2] sm:$0xff] %v15
  // Predicated region
  $region10: #{net_forward.1} parent=0 // pred_check
    _
  $region11: #{net_forward.1} parent=0 // pred_check_branch
    %18 = sbr.rel (0) target = $region13
  $region12: #{net_forward.1} parent=0 // pred_region
    _
  $region13: #{net_forward.1} parent=0 // pred_fallthru
    _
  // Predicated region
  $region14: #{net_forward.1} parent=0 // pred_check
    _
  $region15: #{net_forward.1} parent=0 // pred_check_branch
    %20 = sbr.rel (0) target = $region17
  $region16: #{net_forward.1} parent=0 // pred_region
    _
  $region17: #{net_forward.1} parent=0 // pred_fallthru
    _

</llo_original>
